<compile_context>
chip_gen: v6e
topology: v6e:2x2x1
jax: 0.10.0
libtpu: 0.0.40
codegen_flags: <defaults>
</compile_context>

<pallas_src>
import math

import jax
import jax.numpy as jnp
from jax.experimental import pallas as pl
from jax.experimental.pallas import tpu as pltpu


# ----------------------------------------------------------------------------
# helpers
# ----------------------------------------------------------------------------
def _round_up(x, m):
    return (x + m - 1) // m * m


def _pad_to(a, shape, dtype):
    """Zero-pad `a` up to `shape` and cast to `dtype` (no-op when already there)."""
    if tuple(a.shape) == tuple(shape) and a.dtype == jnp.dtype(dtype):
        return a
    out = jnp.zeros(shape, dtype)
    return out.at[tuple(slice(0, s) for s in a.shape)].set(a.astype(dtype))


def _choose_tm(M, block_m):
    """Row tile: multiple of 16 (bf16 sublane packing); split small M into >=2
    tiles (v7x dual TensorCore); bound last-tile padding waste for ragged M."""
    Ma = _round_up(max(M, 1), 16)
    if Ma <= block_m:
        if Ma >= 64:                         # give both v7x TCs work
            return _round_up((Ma + 1) // 2, 16)
        return Ma
    best, best_waste = 128, None
    for tm in range(block_m, 127, -128):     # prefer large 128-multiples
        waste = _round_up(Ma, tm) - Ma
        if waste * 8 <= Ma:                  # <= 12.5% padded rows -> take it
            return tm
        if best_waste is None or waste < best_waste:
            best, best_waste = tm, waste
    return best


def _choose_th(Hp, target):
    """Hidden tile: largest multiple of 128 dividing Hp, capped at `target`."""
    if Hp <= target:
        return Hp
    for th in range(target, 127, -128):
        if Hp % th == 0:
            return th
    return 128


def _vmem_limit_bytes():
    """~78% of physical VMEM: ~50 MiB on v7x (64 MiB), ~100 MiB on v5e/v6e."""
    try:
        cap = int(pltpu.get_tpu_info().vmem_capacity_bytes)
    except Exception:
        cap = 64 * 1024 * 1024
    return min(int(cap * 0.78), 100 * 1024 * 1024)


# ----------------------------------------------------------------------------
# fused MLP kernel:  x @ W1 + b1 -> GELU -> @ W2 + b2   (H-chunked reduction)
# ----------------------------------------------------------------------------
def _mlp_proj_kernel(x_ref, w1_ref, b1_ref, w2_ref, b2_ref, o_ref, acc_ref):
    # x_ref : (tm, Kp) bf16    w1_ref: (Kp, th) bf16    b1_ref: (1, th) f32
    # w2_ref: (th, Np) bf16    b2_ref: (1, Np) f32      o_ref : (tm, Np)
    # acc_ref: (tm, Np) f32 scratch, resident across the H (reduction) axis.
    h = pl.program_id(1)

    @pl.when(h == 0)
    def _():
        acc_ref[...] = jnp.zeros_like(acc_ref)

    a = jnp.dot(x_ref[...], w1_ref[...],
                preferred_element_type=jnp.float32) + b1_ref[...]
    # TODO(synk): torch.nn.GELU() default is the exact erf GELU; the tanh
    # approximation is used here for portable Mosaic lowering (tiny deviation).
    a = jax.nn.gelu(a, approximate=True)
    acc_ref[...] += jnp.dot(a.astype(jnp.bfloat16), w2_ref[...],
                            preferred_element_type=jnp.float32)

    @pl.when(h == pl.num_programs(1) - 1)
    def _():
        o_ref[...] = (acc_ref[...] + b2_ref[...]).astype(o_ref.dtype)


# ----------------------------------------------------------------------------
# wrappers
# ----------------------------------------------------------------------------
def prepare_mlp_proj_weights(w1, b1, w2, b2):
    """Pad to lane-dense 128-multiples and cast to MXU dtypes ONCE (at init)."""
    K, H = w1.shape
    H2, N = w2.shape
    assert H2 == H, "lin2 in-features must match lin1 out-features"
    Kp, Hp, Np = _round_up(K, 128), _round_up(H, 128), _round_up(N, 128)
    padded = dict(
        w1=_pad_to(w1, (Kp, Hp), jnp.bfloat16),
        b1=_pad_to(b1.reshape(1, -1), (1, Hp), jnp.float32),
        w2=_pad_to(w2, (Hp, Np), jnp.bfloat16),
        b2=_pad_to(b2.reshape(1, -1), (1, Np), jnp.float32),
    )
    return padded, (K, H, N)


def mlp_proj_prepared(x, padded, *, dims, out_dtype=None, block_m=256,
                      block_h=512):
    """Fused MLPProj forward on pre-padded weights. x: (..., K) -> (..., N)."""
    K, H, N = dims
    out_dtype = x.dtype if out_dtype is None else out_dtype

    orig_shape = x.shape
    x2 = x.reshape(-1, K)
    M = x2.shape[0]

    Kp, Hp = padded["w1"].shape
    Np = padded["w2"].shape[1]

    tm = _choose_tm(M, block_m)
    th = _choose_th(Hp, block_h)
    Mp = _round_up(M, tm)
    nm, nh = Mp // tm, Hp // th

    xp = _pad_to(x2, (Mp, Kp), jnp.bfloat16)   # only x padded per call

    def spec(shape, imap, nbuf=None):
        if nbuf is None:
            return pl.BlockSpec(shape, imap)
        return pl.BlockSpec(shape, imap, pipeline_mode=pl.Buffered(nbuf))

    # Single-buffer anything whose block index never changes over the grid.
    x_buf = 1 if nm == 1 else None
    w_buf = 1 if nh == 1 else None

    cost = pl.CostEstimate(
        flops=2 * Mp * (Kp * Hp + Hp * Np),
        transcendentals=Mp * Hp,
        bytes_accessed=(Mp * Kp * 2 + Kp * Hp * 2 + Hp * Np * 2
                        + 4 * (Hp + Np)
                        + Mp * Np * jnp.dtype(out_dtype).itemsize),
    )

    out = pl.pallas_call(
        _mlp_proj_kernel,
        grid=(nm, nh),
        out_shape=jax.ShapeDtypeStruct((Mp, Np), out_dtype),
        in_specs=[
            spec((tm, Kp), lambda i, h: (i, 0), x_buf),   # x: row-tiled
            spec((Kp, th), lambda i, h: (0, h), w_buf),   # W1: H-column chunk
            spec((1, th), lambda i, h: (0, h), w_buf),    # b1: H chunk
            spec((th, Np), lambda i, h: (h, 0), w_buf),   # W2: H-row chunk
            spec((1, Np), lambda i, h: (0, 0), 1),        # b2: resident
        ],
        out_specs=pl.BlockSpec((tm, Np), lambda i, h: (i, 0)),
        scratch_shapes=[pltpu.VMEM((tm, Np), jnp.float32)],
        compiler_params=pltpu.CompilerParams(
            dimension_semantics=("parallel", "arbitrary"),
            vmem_limit_bytes=_vmem_limit_bytes(),
        ),
        cost_estimate=cost,
    )(xp, padded["w1"], padded["b1"], padded["w2"], padded["b2"])

    return out[:M, :N].reshape(orig_shape[:-1] + (N,))


def mlp_proj(x, w1, b1, w2, b2, *, out_dtype=None, block_m=256, block_h=512):
    """Convenience wrapper: pads weights on the fly (prefer MLPProj for reuse)."""
    padded, dims = prepare_mlp_proj_weights(w1, b1, w2, b2)
    return mlp_proj_prepared(x, padded, dims=dims, out_dtype=out_dtype,
                             block_m=block_m, block_h=block_h)


# ----------------------------------------------------------------------------
# module-style wrapper + pure-JAX reference
# ----------------------------------------------------------------------------
def init_mlp_proj_params(key, input_dim, emb_dim, embed_dim=None):
    """torch.nn.Linear-style uniform(-1/sqrt(fan_in), 1/sqrt(fan_in)) init."""
    embed_dim = emb_dim if embed_dim is None else embed_dim  # lin2 in-features
    k1, k2, k3, k4 = jax.random.split(key, 4)
    b1_bound = 1.0 / math.sqrt(input_dim)
    b2_bound = 1.0 / math.sqrt(embed_dim)
    return dict(
        w1=jax.random.uniform(k1, (input_dim, emb_dim), jnp.float32, -b1_bound, b1_bound),
        b1=jax.random.uniform(k2, (emb_dim,), jnp.float32, -b1_bound, b1_bound),
        w2=jax.random.uniform(k3, (embed_dim, emb_dim), jnp.float32, -b2_bound, b2_bound),
        b2=jax.random.uniform(k4, (emb_dim,), jnp.float32, -b2_bound, b2_bound),
    )


_mlp_proj_prepared_jit = jax.jit(
    mlp_proj_prepared,
    static_argnames=("dims", "out_dtype", "block_m", "block_h"))


class MLPProj:
    """JAX/Pallas counterpart of the PyTorch MLPProj module."""

    def __init__(self, key, config, input_dim, output_dim=None):
        # `output_dim` is accepted but unused -- mirrors the reference module,
        # whose lin2 always outputs config.emb_dim.
        del output_dim
        self.params = init_mlp_proj_params(
            key, input_dim, config["emb_dim"], config.get("embed_dim"))
        # Perf feedback: pad / cast weights once here, not per forward call.
        self.prepared, self.dims = prepare_mlp_proj_weights(**self.params)
        self.out_dtype = config.get("out_dtype", None)

    def __call__(self, x):
        return _mlp_proj_prepared_jit(x, self.prepared, dims=self.dims,
                                      out_dtype=self.out_dtype)


def mlp_proj_ref(x, w1, b1, w2, b2):
    h = jax.nn.gelu(x.astype(jnp.float32) @ w1 + b1, approximate=True)
    return h @ w2 + b2


# ----------------------------------------------------------------------------
# main
# ----------------------------------------------------------------------------
if __name__ == "__main__":
    key = jax.random.PRNGKey(0)
    kp1, kx1, kp2, kx2 = jax.random.split(key, 4)

    # Case 1: small, lane-unaligned shapes through the module wrapper
    # (exercises the 128-lane padding path and init-time weight prep).
    cfg = dict(emb_dim=32, embed_dim=32)
    B, S, input_dim = 2, 8, 48
    mod = MLPProj(kp1, cfg, input_dim)
    x = jax.random.normal(kx1, (B, S, input_dim), jnp.float32)
    out = jax.block_until_ready(mod(x))
    ref = mlp_proj_ref(x, **mod.params)
    assert out.shape == (B, S, cfg["emb_dim"]), out.shape
    assert bool(jnp.all(jnp.isfinite(out)))
    assert bool(jnp.allclose(out, ref, rtol=5e-2, atol=5e-2)), \
        float(jnp.max(jnp.abs(out - ref)))

    # Case 2: real M grid (4 parallel row tiles) + H-tiled reduction axis
    # (Hp=640 -> th=128, 5 accumulation steps) + bf16 output writeback.
    B2, S2, in2, emb2 = 4, 256, 128, 640
    p2 = init_mlp_proj_params(kp2, in2, emb2)
    x2 = jax.random.normal(kx2, (B2, S2, in2), jnp.float32)
    fwd = jax.jit(mlp_proj, static_argnames=("out_dtype", "block_m", "block_h"))
    out2 = jax.block_until_ready(
        fwd(x2, p2["w1"], p2["b1"], p2["w2"], p2["b2"], out_dtype=jnp.bfloat16))
    ref2 = mlp_proj_ref(x2, **p2)
    assert out2.shape == (B2, S2, emb2), out2.shape
    assert out2.dtype == jnp.bfloat16, out2.dtype
    assert bool(jnp.all(jnp.isfinite(out2.astype(jnp.float32))))
    assert bool(jnp.allclose(out2.astype(jnp.float32), ref2, rtol=5e-2, atol=5e-2)), \
        float(jnp.max(jnp.abs(out2.astype(jnp.float32) - ref2)))

    print("KERNEL_OK")
</pallas_src>

<mosaic_0001>
module attributes {stable_mosaic.version = 11 : i64} {
  func.func @_mlp_proj_kernel(%arg0: i32, %arg1: i32, %arg2: memref<16x128xbf16, #tpu.memory_space<vmem>>, %arg3: memref<128x128xbf16, #tpu.memory_space<vmem>>, %arg4: memref<1x128xf32, #tpu.memory_space<vmem>>, %arg5: memref<128x128xbf16, #tpu.memory_space<vmem>>, %arg6: memref<1x128xf32, #tpu.memory_space<vmem>>, %arg7: memref<16x128xf32, #tpu.memory_space<vmem>>, %arg8: memref<16x128xf32, #tpu.memory_space<vmem>>) attributes {dimension_semantics = [#tpu.dimension_semantics<parallel>, #tpu.dimension_semantics<arbitrary>], iteration_bounds = array<i64: 1, 1>, scalar_prefetch = 0 : i64, scratch_operands = 1 : i64, tpu.core_type = #tpu.core_type<tc>, window_params = [{pipeline_mode = #tpu.pipeline_mode<synchronous>, transform_indices = @transform_0, window_bounds = array<i64: 16, 128>}, {pipeline_mode = #tpu.pipeline_mode<synchronous>, transform_indices = @transform_1, window_bounds = array<i64: 128, 128>}, {pipeline_mode = #tpu.pipeline_mode<synchronous>, transform_indices = @transform_2, window_bounds = array<i64: 1, 128>}, {pipeline_mode = #tpu.pipeline_mode<synchronous>, transform_indices = @transform_3, window_bounds = array<i64: 128, 128>}, {pipeline_mode = #tpu.pipeline_mode<synchronous>, transform_indices = @transform_4, window_bounds = array<i64: 1, 128>}, {transform_indices = @transform_5, window_bounds = array<i64: 16, 128>}]} {
    %c0_i32 = arith.constant 0 : i32
    %0 = arith.cmpi eq, %arg1, %c0_i32 : i32
    %1 = arith.extui %0 : i1 to i32
    %c0_i32_0 = arith.constant 0 : i32
    %2 = arith.cmpi ne, %1, %c0_i32_0 : i32
    scf.if %2 {
      %cst_19 = arith.constant 0.000000e+00 : f32
      %31 = vector.broadcast %cst_19 : f32 to vector<16x128xf32>
      %c0_20 = arith.constant 0 : index
      %c0_21 = arith.constant 0 : index
      %32 = vector.load %arg8[%c0_20, %c0_21] : memref<16x128xf32, #tpu.memory_space<vmem>>, vector<16x128xf32>
      tpu.vector_store %arg8[%c0_20, %c0_21], %31 {strides = array<i32>} : memref<16x128xf32, #tpu.memory_space<vmem>>, vector<16x128xf32>,
    } else {
    }
    %c0 = arith.constant 0 : index
    %c0_1 = arith.constant 0 : index
    %3 = vector.load %arg2[%c0, %c0_1] : memref<16x128xbf16, #tpu.memory_space<vmem>>, vector<16x128xbf16>
    %c0_2 = arith.constant 0 : index
    %c0_3 = arith.constant 0 : index
    %4 = vector.load %arg3[%c0_2, %c0_3] : memref<128x128xbf16, #tpu.memory_space<vmem>>, vector<128x128xbf16>
    %cst = arith.constant dense<0.000000e+00> : vector<16x128xf32>
    %5 = tpu.matmul %3, %4, %cst {dimension_numbers = #tpu.dot_dimension_numbers<[1], [0], [0], [1], [0, 0, 1, 1], [], []>} : vector<16x128xbf16>, vector<128x128xbf16>, vector<16x128xf32> -> vector<16x128xf32>
    %c0_4 = arith.constant 0 : index
    %c0_5 = arith.constant 0 : index
    %6 = vector.load %arg4[%c0_4, %c0_5] : memref<1x128xf32, #tpu.memory_space<vmem>>, vector<1x128xf32>
    %7 = vector.broadcast %6 : vector<1x128xf32> to vector<16x128xf32>
    %8 = arith.addf %5, %7 : vector<16x128xf32>
    %9 = arith.mulf %8, %8 : vector<16x128xf32>
    %10 = arith.mulf %8, %9 : vector<16x128xf32>
    %cst_6 = arith.constant 4.471500e-02 : f32
    %11 = vector.broadcast %cst_6 : f32 to vector<16x128xf32>
    %12 = arith.mulf %11, %10 : vector<16x128xf32>
    %13 = arith.addf %8, %12 : vector<16x128xf32>
    %cst_7 = arith.constant 0.797884583 : f32
    %14 = vector.broadcast %cst_7 : f32 to vector<16x128xf32>
    %15 = arith.mulf %14, %13 : vector<16x128xf32>
    %16 = math.tanh %15 : vector<16x128xf32>
    %cst_8 = arith.constant 1.000000e+00 : f32
    %17 = vector.broadcast %cst_8 : f32 to vector<16x128xf32>
    %18 = arith.addf %17, %16 : vector<16x128xf32>
    %cst_9 = arith.constant 5.000000e-01 : f32
    %19 = vector.broadcast %cst_9 : f32 to vector<16x128xf32>
    %20 = arith.mulf %19, %18 : vector<16x128xf32>
    %21 = arith.mulf %8, %20 : vector<16x128xf32>
    %c0_10 = arith.constant 0 : index
    %c0_11 = arith.constant 0 : index
    %22 = vector.load %arg8[%c0_10, %c0_11] : memref<16x128xf32, #tpu.memory_space<vmem>>, vector<16x128xf32>
    %23 = arith.truncf %21 : vector<16x128xf32> to vector<16x128xbf16>
    %c0_12 = arith.constant 0 : index
    %c0_13 = arith.constant 0 : index
    %24 = vector.load %arg5[%c0_12, %c0_13] : memref<128x128xbf16, #tpu.memory_space<vmem>>, vector<128x128xbf16>
    %cst_14 = arith.constant dense<0.000000e+00> : vector<16x128xf32>
    %25 = tpu.matmul %23, %24, %cst_14 {dimension_numbers = #tpu.dot_dimension_numbers<[1], [0], [0], [1], [0, 0, 1, 1], [], []>} : vector<16x128xbf16>, vector<128x128xbf16>, vector<16x128xf32> -> vector<16x128xf32>
    %26 = arith.addf %22, %25 : vector<16x128xf32>
    %c0_15 = arith.constant 0 : index
    %c0_16 = arith.constant 0 : index
    %27 = vector.load %arg8[%c0_15, %c0_16] : memref<16x128xf32, #tpu.memory_space<vmem>>, vector<16x128xf32>
    tpu.vector_store %arg8[%c0_15, %c0_16], %26 {strides = array<i32>} : memref<16x128xf32, #tpu.memory_space<vmem>>, vector<16x128xf32>,
    %c0_i32_17 = arith.constant 0 : i32
    %28 = arith.cmpi eq, %arg1, %c0_i32_17 : i32
    %29 = arith.extui %28 : i1 to i32
    %c0_i32_18 = arith.constant 0 : i32
    %30 = arith.cmpi ne, %29, %c0_i32_18 : i32
    scf.if %30 {
      %c0_19 = arith.constant 0 : index
      %c0_20 = arith.constant 0 : index
      %31 = vector.load %arg8[%c0_19, %c0_20] : memref<16x128xf32, #tpu.memory_space<vmem>>, vector<16x128xf32>
      %c0_21 = arith.constant 0 : index
      %c0_22 = arith.constant 0 : index
      %32 = vector.load %arg6[%c0_21, %c0_22] : memref<1x128xf32, #tpu.memory_space<vmem>>, vector<1x128xf32>
      %33 = vector.broadcast %32 : vector<1x128xf32> to vector<16x128xf32>
      %34 = arith.addf %31, %33 : vector<16x128xf32>
      %c0_23 = arith.constant 0 : index
      %c0_24 = arith.constant 0 : index
      %35 = vector.load %arg7[%c0_23, %c0_24] : memref<16x128xf32, #tpu.memory_space<vmem>>, vector<16x128xf32>
      tpu.vector_store %arg7[%c0_23, %c0_24], %34 {strides = array<i32>} : memref<16x128xf32, #tpu.memory_space<vmem>>, vector<16x128xf32>,
    } else {
    }
    return
  }
  func.func @transform_0(%arg0: i32, %arg1: i32) -> (i32, i32) {
    %c0_i32 = arith.constant 0 : i32
    %c0_i32_0 = arith.constant 0 : i32
    return %arg0, %c0_i32 : i32, i32
  }
  func.func @transform_1(%arg0: i32, %arg1: i32) -> (i32, i32) {
    %c0_i32 = arith.constant 0 : i32
    %c0_i32_0 = arith.constant 0 : i32
    return %c0_i32, %arg1 : i32, i32
  }
  func.func @transform_2(%arg0: i32, %arg1: i32) -> (i32, i32) {
    %c0_i32 = arith.constant 0 : i32
    %c0_i32_0 = arith.constant 0 : i32
    return %c0_i32, %arg1 : i32, i32
  }
  func.func @transform_3(%arg0: i32, %arg1: i32) -> (i32, i32) {
    %c0_i32 = arith.constant 0 : i32
    %c0_i32_0 = arith.constant 0 : i32
    return %arg1, %c0_i32 : i32, i32
  }
  func.func @transform_4(%arg0: i32, %arg1: i32) -> (i32, i32) {
    %c0_i32 = arith.constant 0 : i32
    %c0_i32_0 = arith.constant 0 : i32
    %c0_i32_1 = arith.constant 0 : i32
    return %c0_i32, %c0_i32_0 : i32, i32
  }
  func.func @transform_5(%arg0: i32, %arg1: i32) -> (i32, i32) {
    %c0_i32 = arith.constant 0 : i32
    %c0_i32_0 = arith.constant 0 : i32
    return %arg0, %c0_i32 : i32, i32
  }
}

</mosaic_0001>

<llo_original>
// kernel: mlp_proj_prepared.1
$region0: #{mlp_proj_prepared.1}
  #allocation0 [shape = 'u32[]', space=smem, size = 0x4, offset = 0x4, fixed_abs, tag = 'smem constant byte address 0x4 - core index']
  #allocation1 [shape = 'u32[144,128]{1,0:T(1,128)}', space=vmem, size = 0x12000, scoped, tag = 'internal scratch']
  #allocation2 [shape = 'f32[16,128]{1,0:T(8,128)}', space=vmem, size = 0x2000, scoped, tag = 'scratch operand']
  %s0 = inlined_call_operand.vmem [shape: bf16[16,128], index: 0, kind: input, shape index: {}]
  %s1 = inlined_call_operand.hbm [shape: bf16[128,128], index: 1, kind: input, shape index: {}]
  %s2 = inlined_call_operand.vmem [shape: f32[1,128], index: 2, kind: input, shape index: {}]
  %s3 = inlined_call_operand.hbm [shape: bf16[128,128], index: 3, kind: input, shape index: {}]
  %s4 = inlined_call_operand.vmem [shape: f32[1,128], index: 4, kind: input, shape index: {}]
  %s5 = inlined_call_operand.vmem [shape: f32[16,128], index: 5, kind: output, shape index: {}]
  %s6 = sld [smem:[#allocation0]]
  $region46: #{mlp_proj_prepared.1} parent=0
    _
  %s8 = ssub.s32 1, %s6
  %s9 = scalar_select 0, %s8, %s6
  $region1: #{mlp_proj_prepared.1} parent=0
    #allocation3 [shape = 'u8[32768]{0}', space=vmem, size = 0x8000, scoped, tag = 'input window, operand 1, single buffered']
    #allocation4 [shape = 's32[1]{0}', space=sflag, size = 0x4, scoped, tag = 'scoped memory for mlp_proj_prepared.1']
    #allocation5 [shape = 'u8[32768]{0}', space=vmem, size = 0x8000, scoped, tag = 'input window, operand 3, single buffered']
    #allocation6 [shape = 's32[1]{0}', space=sflag, size = 0x4, scoped, tag = 'scoped memory for mlp_proj_prepared.1']
    %10 = vsyncpa [#allocation4], 0
    %11 = vsyncpa [#allocation6], 0
    // Predicated region
    $region2: #{mlp_proj_prepared.1} parent=1 // pred_check
      _
    $region3: #{mlp_proj_prepared.1} parent=1 // pred_check_branch
      %13 = sbr.rel (0) target = $region5
    $region4: #{mlp_proj_prepared.1} parent=1 // pred_region
      _
    $region5: #{mlp_proj_prepared.1} parent=1 // pred_fallthru
      _
    // Predicated region
    $region6: #{mlp_proj_prepared.1} parent=1 // pred_check
      _
    $region7: #{mlp_proj_prepared.1} parent=1 // pred_check_branch
      %15 = sbr.rel (0) target = $region9
    $region8: #{mlp_proj_prepared.1} parent=1 // pred_region
      %s17 = ssub.s32 1024, 1024
      %18 = vsyncadd [#allocation4], %s17
      %s19 = sshll.u32 [#allocation3], 4
      %s20 = int_to_ptr.vmem [resolvable:$true] %s19
      %25 = dma.hbm_to_vmem [thread:$0]  %s1, 1024, %s20, [#allocation4], 64, 64, 4
    $region9: #{mlp_proj_prepared.1} parent=1 // pred_fallthru
      _
    // Predicated region
    $region10: #{mlp_proj_prepared.1} parent=1 // pred_check
      _
    $region11: #{mlp_proj_prepared.1} parent=1 // pred_check_branch
      %27 = sbr.rel (0) target = $region13
    $region12: #{mlp_proj_prepared.1} parent=1 // pred_region
      _
    $region13: #{mlp_proj_prepared.1} parent=1 // pred_fallthru
      _
    // Predicated region
    $region14: #{mlp_proj_prepared.1} parent=1 // pred_check
      _
    $region15: #{mlp_proj_prepared.1} parent=1 // pred_check_branch
      %29 = sbr.rel (0) target = $region17
    $region16: #{mlp_proj_prepared.1} parent=1 // pred_region
      %s31 = ssub.s32 1024, 1024
      %32 = vsyncadd [#allocation6], %s31
      %s33 = sshll.u32 [#allocation5], 4
      %s34 = int_to_ptr.vmem [resolvable:$true] %s33
      %39 = dma.hbm_to_vmem [thread:$0]  %s3, 1024, %s34, [#allocation6], 64, 64, 4
    $region17: #{mlp_proj_prepared.1} parent=1 // pred_fallthru
      _
    // Predicated region
    $region18: #{mlp_proj_prepared.1} parent=1 // pred_check
      _
    $region19: #{mlp_proj_prepared.1} parent=1 // pred_check_branch
      %41 = sbr.rel (0) target = $region21
    $region20: #{mlp_proj_prepared.1} parent=1 // pred_region
      _
    $region21: #{mlp_proj_prepared.1} parent=1 // pred_fallthru
      _
    // Predicated region
    $region22: #{mlp_proj_prepared.1} parent=1 // pred_check
      _
    $region23: #{mlp_proj_prepared.1} parent=1 // pred_check_branch
      %43 = sbr.rel (0) target = $region25
    $region24: #{mlp_proj_prepared.1} parent=1 // pred_region
      %44 = dma.done [#allocation4], 1024
    $region25: #{mlp_proj_prepared.1} parent=1 // pred_fallthru
      _
    // Predicated region
    $region26: #{mlp_proj_prepared.1} parent=1 // pred_check
      _
    $region27: #{mlp_proj_prepared.1} parent=1 // pred_check_branch
      %46 = sbr.rel (0) target = $region29
    $region28: #{mlp_proj_prepared.1} parent=1 // pred_region
      %47 = dma.done [#allocation6], 1024
    $region29: #{mlp_proj_prepared.1} parent=1 // pred_fallthru
      _
    %p49 = scmp.eq.s32.totalorder 0, 0
    // Predicated region
    $region30: #{mlp_proj_prepared.1} parent=1 // pred_check
      %p50 = pneg %p49
    $region31: #{mlp_proj_prepared.1} parent=1 // pred_check_branch
      %52 = sbr.rel (%p50) target = $region33
    $region32: #{mlp_proj_prepared.1} parent=1 // pred_region
      %53 = vst [vmem:[#allocation2] sm:$0xff] 0.0
      %54 = vst [vmem:[#allocation2 + $0x8] sm:$0xff] 0.0
    $region33: #{mlp_proj_prepared.1} parent=1 // pred_fallthru
      _
    %v55 = vld [vmem:[%s0] sm:$0xf]
    %v56 = vld [vmem:[%s0 + $0x4] sm:$0xf]
    %v57 = vld [vmem:[#allocation3] sm:$0xf]
    %v58 = vld [vmem:[#allocation3 + $0x4] sm:$0xf]
    %v59 = vld [vmem:[#allocation3 + $0x8] sm:$0xf]
    %v60 = vld [vmem:[#allocation3 + $0xc] sm:$0xf]
    %v61 = vld [vmem:[#allocation3 + $0x10] sm:$0xf]
    %v62 = vld [vmem:[#allocation3 + $0x14] sm:$0xf]
    %v63 = vld [vmem:[#allocation3 + $0x18] sm:$0xf]
    %v64 = vld [vmem:[#allocation3 + $0x1c] sm:$0xf]
    %v65 = vld [vmem:[#allocation3 + $0x20] sm:$0xf]
    %v66 = vld [vmem:[#allocation3 + $0x24] sm:$0xf]
    %v67 = vld [vmem:[#allocation3 + $0x28] sm:$0xf]
    %v68 = vld [vmem:[#allocation3 + $0x2c] sm:$0xf]
    %v69 = vld [vmem:[#allocation3 + $0x30] sm:$0xf]
    %v70 = vld [vmem:[#allocation3 + $0x34] sm:$0xf]
    %v71 = vld [vmem:[#allocation3 + $0x38] sm:$0xf]
    %v72 = vld [vmem:[#allocation3 + $0x3c] sm:$0xf]
    %v73 = vld [vmem:[%s2] sm:$0x1]
    %v75 = vlaneseq
    %v76 = vshrl.u32 %v75, 7
    %v77 = vsub.s32 0, %v76
    %v78 = vrot.slane %v73, %v77
    %v82 = vunpack.c.l.b16 %v55
    %v83 = vunpack.c.l.b16 %v56
    %v84 = vpack.c.b16 %v83, %v82
    %v102 = vunpack.c.l.b16 %v57
    %v103 = vunpack.c.l.b16 %v58
    %v104 = vunpack.c.l.b16 %v59
    %v105 = vunpack.c.l.b16 %v60
    %v106 = vunpack.c.l.b16 %v61
    %v107 = vunpack.c.l.b16 %v62
    %v108 = vunpack.c.l.b16 %v63
    %v109 = vunpack.c.l.b16 %v64
    %v110 = vunpack.c.l.b16 %v65
    %v111 = vunpack.c.l.b16 %v66
    %v112 = vunpack.c.l.b16 %v67
    %v113 = vunpack.c.l.b16 %v68
    %v114 = vunpack.c.l.b16 %v69
    %v115 = vunpack.c.l.b16 %v70
    %v116 = vunpack.c.l.b16 %v71
    %v117 = vunpack.c.l.b16 %v72
    %v118 = vpack.c.b16 %v103, %v102
    %v119 = vpack.c.b16 %v105, %v104
    %v120 = vpack.c.b16 %v107, %v106
    %v121 = vpack.c.b16 %v109, %v108
    %v122 = vpack.c.b16 %v111, %v110
    %v123 = vpack.c.b16 %v113, %v112
    %v124 = vpack.c.b16 %v115, %v114
    %v125 = vpack.c.b16 %v117, %v116
    %134 = vmatprep.subr.bf16.mxu0 0
    %135 = vmatpush1.bf16.msra.mxu0 %v125
    %136 = vmatprep.subr.bf16.mxu0 0
    %137 = vmatpush1.bf16.msra.mxu0 %v124
    %138 = vmatprep.subr.bf16.mxu0 0
    %139 = vmatpush1.bf16.msra.mxu0 %v123
    %140 = vmatprep.subr.bf16.mxu0 0
    %141 = vmatpush1.bf16.msra.mxu0 %v122
    %142 = vmatprep.subr.bf16.mxu0 0
    %143 = vmatpush1.bf16.msra.mxu0 %v121
    %144 = vmatprep.subr.bf16.mxu0 0
    %145 = vmatpush1.bf16.msra.mxu0 %v120
    %146 = vmatprep.subr.bf16.mxu0 0
    %147 = vmatpush1.bf16.msra.mxu0 %v119
    %148 = vmatprep.subr.bf16.mxu0 0
    %149 = vmatpush1.bf16.msra.mxu0 %v118
    %150 = vmatprep.subr.bf16.mxu0 0
    %151 = vmatpush2.bf16.msra.mxu0 0
    %152 = vmatprep.subr.bf16.mxu0 0
    %153 = vmatpush2.bf16.msra.mxu0 0
    %154 = vmatprep.subr.bf16.mxu0 0
    %155 = vmatpush2.bf16.msra.mxu0 0
    %156 = vmatprep.subr.bf16.mxu0 0
    %157 = vmatpush2.bf16.msra.mxu0 0
    %158 = vmatprep.subr.bf16.mxu0 0
    %159 = vmatpush2.bf16.msra.mxu0 0
    %160 = vmatprep.subr.bf16.mxu0 0
    %161 = vmatpush2.bf16.msra.mxu0 0
    %162 = vmatprep.subr.bf16.mxu0 0
    %163 = vmatpush2.bf16.msra.mxu0 0
    %164 = vmatprep.subr.bf16.mxu0 0
    %165 = vmatpush2.bf16.msra.mxu0 0
    %166 = vmatprep.mubr.bf16.mxu0 0
    %167 = vmatmul.mubr.bf16.gmra.mxu0 %v84
    %v168 = vpop.f32.mrf.mxu0
    %v169 = vadd.f32 %v78, %v168
    %v170 = vpop.f32.mrf.mxu0
    %v171 = vpop.f32.mrf.mxu0
    %v172 = vadd.f32 %v78, %v171
    %v173 = vpop.f32.mrf.mxu0
    %174 = vdwg.mxu0
    %v175 = vmul.f32 %v169, %v169
    %v176 = vmul.f32 %v172, %v172
    %v177 = vmul.f32 %v169, %v175
    %v178 = vmul.f32 %v172, %v176
    %v179 = vmul.f32 %v177, 0.044715
    %v180 = vmul.f32 %v178, 0.044715
    %v181 = vadd.f32 %v169, %v179
    %v182 = vadd.f32 %v172, %v180
    %v183 = vmul.f32 %v181, 0.7978846
    %v184 = vmul.f32 %v182, 0.7978846
    %v185 = vtanh.pop %v183
    %v186 = vtanh.pop %v184
    %v187 = vadd.f32 %v185, 1.0
    %v188 = vadd.f32 %v186, 1.0
    %v189 = vmul.f32 %v187, 0.5
    %v190 = vmul.f32 %v188, 0.5
    %v191 = vmul.f32 %v169, %v189
    %v192 = vmul.f32 %v172, %v190
    %v193 = vld [vmem:[#allocation2] sm:$0xff]
    %v194 = vld [vmem:[#allocation2 + $0x8] sm:$0xff]
    %v195 = vpack.c.bf16 %v192, %v191
    %v196 = vld [vmem:[#allocation5] sm:$0xf]
    %v197 = vld [vmem:[#allocation5 + $0x4] sm:$0xf]
    %v198 = vld [vmem:[#allocation5 + $0x8] sm:$0xf]
    %v199 = vld [vmem:[#allocation5 + $0xc] sm:$0xf]
    %v200 = vld [vmem:[#allocation5 + $0x10] sm:$0xf]
    %v201 = vld [vmem:[#allocation5 + $0x14] sm:$0xf]
    %v202 = vld [vmem:[#allocation5 + $0x18] sm:$0xf]
    %v203 = vld [vmem:[#allocation5 + $0x1c] sm:$0xf]
    %v204 = vld [vmem:[#allocation5 + $0x20] sm:$0xf]
    %v205 = vld [vmem:[#allocation5 + $0x24] sm:$0xf]
    %v206 = vld [vmem:[#allocation5 + $0x28] sm:$0xf]
    %v207 = vld [vmem:[#allocation5 + $0x2c] sm:$0xf]
    %v208 = vld [vmem:[#allocation5 + $0x30] sm:$0xf]
    %v209 = vld [vmem:[#allocation5 + $0x34] sm:$0xf]
    %v210 = vld [vmem:[#allocation5 + $0x38] sm:$0xf]
    %v211 = vld [vmem:[#allocation5 + $0x3c] sm:$0xf]
    %v228 = vunpack.c.l.b16 %v196
    %v229 = vunpack.c.l.b16 %v197
    %v230 = vunpack.c.l.b16 %v198
    %v231 = vunpack.c.l.b16 %v199
    %v232 = vunpack.c.l.b16 %v200
    %v233 = vunpack.c.l.b16 %v201
    %v234 = vunpack.c.l.b16 %v202
    %v235 = vunpack.c.l.b16 %v203
    %v236 = vunpack.c.l.b16 %v204
    %v237 = vunpack.c.l.b16 %v205
    %v238 = vunpack.c.l.b16 %v206
    %v239 = vunpack.c.l.b16 %v207
    %v240 = vunpack.c.l.b16 %v208
    %v241 = vunpack.c.l.b16 %v209
    %v242 = vunpack.c.l.b16 %v210
    %v243 = vunpack.c.l.b16 %v211
    %v244 = vpack.c.b16 %v229, %v228
    %v245 = vpack.c.b16 %v231, %v230
    %v246 = vpack.c.b16 %v233, %v232
    %v247 = vpack.c.b16 %v235, %v234
    %v248 = vpack.c.b16 %v237, %v236
    %v249 = vpack.c.b16 %v239, %v238
    %v250 = vpack.c.b16 %v241, %v240
    %v251 = vpack.c.b16 %v243, %v242
    %260 = vmatprep.subr.bf16.mxu0 0
    %261 = vmatpush1.bf16.msra.mxu0 %v251
    %262 = vmatprep.subr.bf16.mxu0 0
    %263 = vmatpush1.bf16.msra.mxu0 %v250
    %264 = vmatprep.subr.bf16.mxu0 0
    %265 = vmatpush1.bf16.msra.mxu0 %v249
    %266 = vmatprep.subr.bf16.mxu0 0
    %267 = vmatpush1.bf16.msra.mxu0 %v248
    %268 = vmatprep.subr.bf16.mxu0 0
    %269 = vmatpush1.bf16.msra.mxu0 %v247
    %270 = vmatprep.subr.bf16.mxu0 0
    %271 = vmatpush1.bf16.msra.mxu0 %v246
    %272 = vmatprep.subr.bf16.mxu0 0
    %273 = vmatpush1.bf16.msra.mxu0 %v245
    %274 = vmatprep.subr.bf16.mxu0 0
    %275 = vmatpush1.bf16.msra.mxu0 %v244
    %276 = vmatprep.subr.bf16.mxu0 0
    %277 = vmatpush2.bf16.msra.mxu0 0
    %278 = vmatprep.subr.bf16.mxu0 0
    %279 = vmatpush2.bf16.msra.mxu0 0
    %280 = vmatprep.subr.bf16.mxu0 0
    %281 = vmatpush2.bf16.msra.mxu0 0
    %282 = vmatprep.subr.bf16.mxu0 0
    %283 = vmatpush2.bf16.msra.mxu0 0
    %284 = vmatprep.subr.bf16.mxu0 0
    %285 = vmatpush2.bf16.msra.mxu0 0
    %286 = vmatprep.subr.bf16.mxu0 0
    %287 = vmatpush2.bf16.msra.mxu0 0
    %288 = vmatprep.subr.bf16.mxu0 0
    %289 = vmatpush2.bf16.msra.mxu0 0
    %290 = vmatprep.subr.bf16.mxu0 0
    %291 = vmatpush2.bf16.msra.mxu0 0
    %292 = vmatprep.mubr.bf16.mxu0 0
    %293 = vmatmul.mubr.bf16.gmra.mxu0 %v195
    %v294 = vpop.f32.mrf.mxu0
    %v295 = vadd.f32 0.0, %v294
    %v296 = vpop.f32.mrf.mxu0
    %v297 = vpop.f32.mrf.mxu0
    %v298 = vadd.f32 0.0, %v297
    %v299 = vpop.f32.mrf.mxu0
    %300 = vdwg.mxu0
    %v301 = vadd.f32 %v193, %v295
    %v302 = vadd.f32 %v194, %v298
    %303 = vst [vmem:[#allocation2] sm:$0xff] %v301
    %304 = vst [vmem:[#allocation2 + $0x8] sm:$0xff] %v302
    // Predicated region
    $region34: #{mlp_proj_prepared.1} parent=1 // pred_check
      %p305 = pneg %p49
    $region35: #{mlp_proj_prepared.1} parent=1 // pred_check_branch
      %307 = sbr.rel (%p305) target = $region37
    $region36: #{mlp_proj_prepared.1} parent=1 // pred_region
      %v308 = vld [vmem:[#allocation2] sm:$0xff]
      %v309 = vld [vmem:[#allocation2 + $0x8] sm:$0xff]
      %v310 = vld [vmem:[%s4] sm:$0x1]
      %v312 = vlaneseq
      %v313 = vshrl.u32 %v312, 7
      %v314 = vsub.s32 0, %v313
      %v315 = vrot.slane %v310, %v314
      %v317 = vadd.f32 %v308, %v315
      %v318 = vadd.f32 %v309, %v315
      %319 = vst [vmem:[%s5] sm:$0xff] %v317
      %320 = vst [vmem:[%s5 + $0x8] sm:$0xff] %v318
    $region37: #{mlp_proj_prepared.1} parent=1 // pred_fallthru
      _
    // Predicated region
    $region38: #{mlp_proj_prepared.1} parent=1 // pred_check
      _
    $region39: #{mlp_proj_prepared.1} parent=1 // pred_check_branch
      %322 = sbr.rel (0) target = $region41
    $region40: #{mlp_proj_prepared.1} parent=1 // pred_region
      _
    $region41: #{mlp_proj_prepared.1} parent=1 // pred_fallthru
      _
    // Predicated region
    $region42: #{mlp_proj_prepared.1} parent=1 // pred_check
      _
    $region43: #{mlp_proj_prepared.1} parent=1 // pred_check_branch
      %324 = sbr.rel (0) target = $region45
    $region44: #{mlp_proj_prepared.1} parent=1 // pred_region
      _
    $region45: #{mlp_proj_prepared.1} parent=1 // pred_fallthru
      _
    %325 = vsyncpa [#allocation4], 1
    %326 = vsyncpa [#allocation6], 1

</llo_original>
